<compile_context>
chip_gen: v5e
topology: v5e:2x2
jax: 0.10.0
libtpu: 0.0.40
codegen_flags: <defaults>
</compile_context>

<pallas_src>
import jax
import jax.numpy as jnp
from jax.experimental import pallas as pl
from jax.experimental.pallas import tpu as pltpu

_INV_SQRT2 = 0.7071067811865476


def _gelu_exact(v):
    # Matches torch.nn.GELU() default (approximate='none'): 0.5*x*(1+erf(x/sqrt(2)))
    return 0.5 * v * (1.0 + jax.lax.erf(v * _INV_SQRT2))


def _edge_kernel(w_ref, b_ref, x_ref, halo_ref, o_ref):
    # w_ref   : (18,) f32 SMEM  -- flattened (2, 1, 3, 3) conv weight
    # b_ref   : (2,)  f32 SMEM  -- conv bias
    # x_ref   : (TB, 3, TH, W) f32 VMEM -- unpadded input row-tile
    # halo_ref: (TB, 1, 2, W)  f32 VMEM -- grayscale halo rows (top, bottom),
    #                                      image-border reflect pre-resolved
    # o_ref   : (TB, 2, TH, W) f32 VMEM
    tb, _, th, w = x_ref.shape

    x = x_ref[...]
    halo = halo_ref[...]

    # Grayscale combine (linear, so it commutes with the reflect padding).
    gray = 0.114 * x[:, 0] + 0.587 * x[:, 1] + 0.299 * x[:, 2]   # (TB, TH, W)
    gtop = halo[:, :, 0, :]                                      # (TB, 1, W)
    gbot = halo[:, :, 1, :]                                      # (TB, 1, W)

    # Vertical halo rows (already reflect-resolved in the wrapper).
    gv = jnp.concatenate([gtop, gray, gbot], axis=1)             # (TB, TH+2, W)

    # Horizontal reflect pad as three column-shifted views (lane width stays W).
    g_l = jnp.concatenate([gv[:, :, 1:2], gv[:, :, :w - 1]], axis=2)      # col j-1
    g_m = gv                                                              # col j
    g_r = jnp.concatenate([gv[:, :, 1:], gv[:, :, w - 2:w - 1]], axis=2)  # col j+1
    cols = (g_l, g_m, g_r)

    # 3x3 conv as 9 shifted FMAs; each shifted slice feeds BOTH output channels.
    acc0 = None
    acc1 = None
    for ki in range(3):
        for kj in range(3):
            s = cols[kj][:, ki:ki + th, :]
            t = ki * 3 + kj
            if acc0 is None:
                acc0 = w_ref[t] * s
                acc1 = w_ref[9 + t] * s
            else:
                acc0 = acc0 + w_ref[t] * s
                acc1 = acc1 + w_ref[9 + t] * s

    o_ref[:, 0] = _gelu_exact(acc0 + b_ref[0])
    o_ref[:, 1] = _gelu_exact(acc1 + b_ref[1])


def edge_extractor_light(x, weight, bias, *, row_tile=None,
                         vmem_budget_bytes=20 << 20):
    """x: (B, 3, H, W) f32; weight: (2, 1, 3, 3) f32; bias: (2,) f32."""
    bn, c, h, w = x.shape
    # TODO(synk): the c == 1 branch of the PyTorch module references an
    # undefined variable (grayscale_x), so only c == 3 is implemented.
    assert c == 3, f"Input channel {c} invalid!"
    assert h >= 2 and w >= 2, "reflect padding of 1 needs spatial dims >= 2"

    x = x.astype(jnp.float32)
    w_flat = weight.reshape(-1).astype(jnp.float32)   # (18,)
    b_flat = bias.reshape(-1).astype(jnp.float32)     # (2,)

    # ----- batch tile: keep >= 2 grid steps along batch when bn > 1 (so both
    # v7x TensorCores get work) while amortizing per-step overhead. ----------
    tb = max(d for d in range(1, bn + 1) if bn % d == 0 and d <= max(1, bn // 2))

    # ----- row tile: largest divisor of H that is a multiple of 8 (or H
    # itself), sized from the (8,128)-padded VMEM footprint per row. ---------
    w_pad = -(-w // 128) * 128
    # ~22 f32 planes of (tb, row, w_pad) live per step (double-buffered blocks
    # + in-kernel temporaries), conservative.
    bytes_per_row = 4 * tb * w_pad * 22
    cap = max(1, vmem_budget_bytes // bytes_per_row)
    if row_tile is not None:
        cap = min(cap, row_tile)
    cands = [d for d in range(1, h + 1) if h % d == 0 and (d == h or d % 8 == 0)]
    fitting = [d for d in cands if d <= cap]
    th = max(fitting) if fitting else min(cands)
    n_bt, n_h = bn // tb, h // th
    # TODO(synk): if H has no multiple-of-8 divisor and a single full-H tile
    # exceeds physical VMEM (extreme image sizes), a remainder-aware row
    # tiling would be needed.

    # ----- reflect-resolved, pre-grayscaled vertical halo rows (tiny). ------
    # For row tile j the halo rows are j*TH-1 / (j+1)*TH, with the image-border
    # rows replaced by their reflections (row 1 / row H-2).
    r = jnp.arange(n_h)
    top_idx = jnp.where(r == 0, 1, r * th - 1)
    bot_idx = jnp.where(r == n_h - 1, h - 2, (r + 1) * th)
    rows_top = jnp.take(x, top_idx, axis=2)   # (B, 3, n_h, W)
    rows_bot = jnp.take(x, bot_idx, axis=2)   # (B, 3, n_h, W)

    def _gray(t):  # (B, 3, n_h, W) -> (B, n_h, W)
        return 0.114 * t[:, 0] + 0.587 * t[:, 1] + 0.299 * t[:, 2]

    halo = jnp.stack([_gray(rows_top), _gray(rows_bot)], axis=2)  # (B, n_h, 2, W)

    # Per-step VMEM estimate (padded layout) -> explicit limit, capped for v7x.
    th_pad = -(-th // 8) * 8
    est = 4 * tb * w_pad * (22 * th_pad + 64)
    vmem_limit = int(min(max(32 << 20, est), 48 << 20))

    smem = pl.BlockSpec(memory_space=pltpu.MemorySpace.SMEM)
    grid_spec = pltpu.PrefetchScalarGridSpec(
        num_scalar_prefetch=0,
        grid=(n_bt, n_h),
        in_specs=[
            smem,                                                     # weight (18,)
            smem,                                                     # bias (2,)
            pl.BlockSpec((tb, 3, th, w), lambda i, j: (i, 0, j, 0)),  # x row-tile
            pl.BlockSpec((tb, 1, 2, w), lambda i, j: (i, j, 0, 0)),   # gray halo rows
        ],
        out_specs=pl.BlockSpec((tb, 2, th, w), lambda i, j: (i, 0, j, 0)),
    )

    return pl.pallas_call(
        _edge_kernel,
        out_shape=jax.ShapeDtypeStruct((bn, 2, h, w), jnp.float32),
        grid_spec=grid_spec,
        compiler_params=pltpu.CompilerParams(
            dimension_semantics=("parallel", "parallel"),
            vmem_limit_bytes=vmem_limit),
    )(w_flat, b_flat, x, halo)


def reference(x, weight, bias):
    """Pure-JAX reference of the PyTorch forward (for correctness check)."""
    gray = 0.114 * x[:, 0] + 0.587 * x[:, 1] + 0.299 * x[:, 2]
    gray = gray[:, None]                                   # (B, 1, H, W)
    gp = jnp.pad(gray, ((0, 0), (0, 0), (1, 1), (1, 1)), mode="reflect")
    out = jax.lax.conv_general_dilated(
        gp, weight, window_strides=(1, 1), padding="VALID",
        dimension_numbers=("NCHW", "OIHW", "NCHW"))
    out = out + bias.reshape(1, 2, 1, 1)
    return _gelu_exact(out)


if __name__ == "__main__":
    # Deterministic parameter init (matches Edge_extractor_light.__init__):
    a = 1.0
    sobel_kernel = jnp.array(
        [[[-a, 0.0, a], [-2 * a, 0.0, 2 * a], [-a, 0.0, a]],
         [[-a, -2 * a, -a], [0.0, 0.0, 0.0], [a, 2 * a, a]]],
        dtype=jnp.float32)
    weight = sobel_kernel[:, None, :, :]          # (2, 1, 3, 3)
    bias = jnp.zeros((2,), dtype=jnp.float32)     # init.constant_(bias, 0.0)

    key = jax.random.PRNGKey(0)
    k1, k2 = jax.random.split(key)

    # Case 1: small natural config (single row tile per image, 2 batch steps).
    x1 = jax.random.normal(k1, (2, 3, 16, 16), dtype=jnp.float32)
    out1 = jax.block_until_ready(edge_extractor_light(x1, weight, bias))
    ref1 = jax.block_until_ready(reference(x1, weight, bias))
    assert out1.shape == (2, 2, 16, 16)
    assert jnp.allclose(out1, ref1, atol=1e-5, rtol=1e-5), \
        f"case1 max abs err = {jnp.max(jnp.abs(out1 - ref1))}"

    # Case 2: exercises the halo'd H-tiling + batch-tiling path (TB=2, TH=8).
    x2 = jax.random.normal(k2, (4, 3, 32, 16), dtype=jnp.float32)
    out2 = jax.block_until_ready(
        edge_extractor_light(x2, weight, bias, row_tile=8))
    ref2 = jax.block_until_ready(reference(x2, weight, bias))
    assert out2.shape == (4, 2, 32, 16)
    assert jnp.allclose(out2, ref2, atol=1e-5, rtol=1e-5), \
        f"case2 max abs err = {jnp.max(jnp.abs(out2 - ref2))}"

    print("KERNEL_OK")
</pallas_src>

<mosaic_0001>
module attributes {stable_mosaic.version = 11 : i64} {
  func.func @_edge_kernel(%arg0: i32, %arg1: i32, %arg2: memref<18xf32, #tpu.memory_space<smem>>, %arg3: memref<2xf32, #tpu.memory_space<smem>>, %arg4: memref<1x3x16x16xf32, #tpu.memory_space<vmem>>, %arg5: memref<1x1x2x16xf32, #tpu.memory_space<vmem>>, %arg6: memref<1x2x16x16xf32, #tpu.memory_space<vmem>>) attributes {dimension_semantics = [#tpu.dimension_semantics<parallel>, #tpu.dimension_semantics<parallel>], iteration_bounds = array<i64: 2, 1>, scalar_prefetch = 0 : i64, scratch_operands = 0 : i64, tpu.core_type = #tpu.core_type<tc>, window_params = [{transform_indices = @transform_0, window_bounds = array<i64: 18>}, {transform_indices = @transform_1, window_bounds = array<i64: 2>}, {transform_indices = @transform_2, window_bounds = array<i64: 1, 3, 16, 16>}, {transform_indices = @transform_3, window_bounds = array<i64: 1, 1, 2, 16>}, {transform_indices = @transform_4, window_bounds = array<i64: 1, 2, 16, 16>}]} {
    %c0 = arith.constant 0 : index
    %c0_0 = arith.constant 0 : index
    %c0_1 = arith.constant 0 : index
    %c0_2 = arith.constant 0 : index
    %0 = vector.load %arg4[%c0, %c0_0, %c0_1, %c0_2] : memref<1x3x16x16xf32, #tpu.memory_space<vmem>>, vector<1x3x16x16xf32>
    %c0_3 = arith.constant 0 : index
    %c0_4 = arith.constant 0 : index
    %c0_5 = arith.constant 0 : index
    %c0_6 = arith.constant 0 : index
    %1 = vector.load %arg5[%c0_3, %c0_4, %c0_5, %c0_6] : memref<1x1x2x16xf32, #tpu.memory_space<vmem>>, vector<1x1x2x16xf32>
    %2 = vector.extract_strided_slice %0 {offsets = [0, 0, 0, 0], sizes = [1, 1, 16, 16], strides = [1, 1, 1, 1]} : vector<1x3x16x16xf32> to vector<1x1x16x16xf32>
    %3 = vector.shape_cast %2 : vector<1x1x16x16xf32> to vector<1x16x16xf32>
    %cst = arith.constant 1.140000e-01 : f32
    %4 = vector.broadcast %cst : f32 to vector<1x16x16xf32>
    %5 = arith.mulf %4, %3 : vector<1x16x16xf32>
    %6 = vector.extract_strided_slice %0 {offsets = [0, 1, 0, 0], sizes = [1, 1, 16, 16], strides = [1, 1, 1, 1]} : vector<1x3x16x16xf32> to vector<1x1x16x16xf32>
    %7 = vector.shape_cast %6 : vector<1x1x16x16xf32> to vector<1x16x16xf32>
    %cst_7 = arith.constant 5.870000e-01 : f32
    %8 = vector.broadcast %cst_7 : f32 to vector<1x16x16xf32>
    %9 = arith.mulf %8, %7 : vector<1x16x16xf32>
    %10 = arith.addf %5, %9 : vector<1x16x16xf32>
    %11 = vector.extract_strided_slice %0 {offsets = [0, 2, 0, 0], sizes = [1, 1, 16, 16], strides = [1, 1, 1, 1]} : vector<1x3x16x16xf32> to vector<1x1x16x16xf32>
    %12 = vector.shape_cast %11 : vector<1x1x16x16xf32> to vector<1x16x16xf32>
    %cst_8 = arith.constant 2.990000e-01 : f32
    %13 = vector.broadcast %cst_8 : f32 to vector<1x16x16xf32>
    %14 = arith.mulf %13, %12 : vector<1x16x16xf32>
    %15 = arith.addf %10, %14 : vector<1x16x16xf32>
    %16 = vector.extract_strided_slice %1 {offsets = [0, 0, 0, 0], sizes = [1, 1, 1, 16], strides = [1, 1, 1, 1]} : vector<1x1x2x16xf32> to vector<1x1x1x16xf32>
    %17 = vector.shape_cast %16 : vector<1x1x1x16xf32> to vector<1x1x16xf32>
    %18 = vector.extract_strided_slice %1 {offsets = [0, 0, 1, 0], sizes = [1, 1, 1, 16], strides = [1, 1, 1, 1]} : vector<1x1x2x16xf32> to vector<1x1x1x16xf32>
    %19 = vector.shape_cast %18 : vector<1x1x1x16xf32> to vector<1x1x16xf32>
    %20 = tpu.concatenate %17, %15, %19 in 1 : vector<1x1x16xf32>, vector<1x16x16xf32>, vector<1x1x16xf32> -> vector<1x18x16xf32>
    %21 = vector.extract_strided_slice %20 {offsets = [0, 0, 1], sizes = [1, 18, 1], strides = [1, 1, 1]} : vector<1x18x16xf32> to vector<1x18x1xf32>
    %22 = vector.extract_strided_slice %20 {offsets = [0, 0, 0], sizes = [1, 18, 15], strides = [1, 1, 1]} : vector<1x18x16xf32> to vector<1x18x15xf32>
    %23 = tpu.concatenate %21, %22 in 2 : vector<1x18x1xf32>, vector<1x18x15xf32> -> vector<1x18x16xf32>
    %24 = vector.extract_strided_slice %20 {offsets = [0, 0, 1], sizes = [1, 18, 15], strides = [1, 1, 1]} : vector<1x18x16xf32> to vector<1x18x15xf32>
    %25 = vector.extract_strided_slice %20 {offsets = [0, 0, 14], sizes = [1, 18, 1], strides = [1, 1, 1]} : vector<1x18x16xf32> to vector<1x18x1xf32>
    %26 = tpu.concatenate %24, %25 in 2 : vector<1x18x15xf32>, vector<1x18x1xf32> -> vector<1x18x16xf32>
    %27 = vector.extract_strided_slice %23 {offsets = [0, 0, 0], sizes = [1, 16, 16], strides = [1, 1, 1]} : vector<1x18x16xf32> to vector<1x16x16xf32>
    %c0_9 = arith.constant 0 : index
    %28 = memref.load %arg2[%c0_9] : memref<18xf32, #tpu.memory_space<smem>>
    %29 = vector.broadcast %28 : f32 to vector<1x16x16xf32>
    %30 = arith.mulf %29, %27 : vector<1x16x16xf32>
    %c9 = arith.constant 9 : index
    %31 = memref.load %arg2[%c9] : memref<18xf32, #tpu.memory_space<smem>>
    %32 = vector.broadcast %31 : f32 to vector<1x16x16xf32>
    %33 = arith.mulf %32, %27 : vector<1x16x16xf32>
    %34 = vector.extract_strided_slice %20 {offsets = [0, 0, 0], sizes = [1, 16, 16], strides = [1, 1, 1]} : vector<1x18x16xf32> to vector<1x16x16xf32>
    %c1 = arith.constant 1 : index
    %35 = memref.load %arg2[%c1] : memref<18xf32, #tpu.memory_space<smem>>
    %36 = vector.broadcast %35 : f32 to vector<1x16x16xf32>
    %37 = arith.mulf %36, %34 : vector<1x16x16xf32>
    %38 = arith.addf %30, %37 : vector<1x16x16xf32>
    %c10 = arith.constant 10 : index
    %39 = memref.load %arg2[%c10] : memref<18xf32, #tpu.memory_space<smem>>
    %40 = vector.broadcast %39 : f32 to vector<1x16x16xf32>
    %41 = arith.mulf %40, %34 : vector<1x16x16xf32>
    %42 = arith.addf %33, %41 : vector<1x16x16xf32>
    %43 = vector.extract_strided_slice %26 {offsets = [0, 0, 0], sizes = [1, 16, 16], strides = [1, 1, 1]} : vector<1x18x16xf32> to vector<1x16x16xf32>
    %c2 = arith.constant 2 : index
    %44 = memref.load %arg2[%c2] : memref<18xf32, #tpu.memory_space<smem>>
    %45 = vector.broadcast %44 : f32 to vector<1x16x16xf32>
    %46 = arith.mulf %45, %43 : vector<1x16x16xf32>
    %47 = arith.addf %38, %46 : vector<1x16x16xf32>
    %c11 = arith.constant 11 : index
    %48 = memref.load %arg2[%c11] : memref<18xf32, #tpu.memory_space<smem>>
    %49 = vector.broadcast %48 : f32 to vector<1x16x16xf32>
    %50 = arith.mulf %49, %43 : vector<1x16x16xf32>
    %51 = arith.addf %42, %50 : vector<1x16x16xf32>
    %52 = vector.extract_strided_slice %23 {offsets = [0, 1, 0], sizes = [1, 16, 16], strides = [1, 1, 1]} : vector<1x18x16xf32> to vector<1x16x16xf32>
    %c3 = arith.constant 3 : index
    %53 = memref.load %arg2[%c3] : memref<18xf32, #tpu.memory_space<smem>>
    %54 = vector.broadcast %53 : f32 to vector<1x16x16xf32>
    %55 = arith.mulf %54, %52 : vector<1x16x16xf32>
    %56 = arith.addf %47, %55 : vector<1x16x16xf32>
    %c12 = arith.constant 12 : index
    %57 = memref.load %arg2[%c12] : memref<18xf32, #tpu.memory_space<smem>>
    %58 = vector.broadcast %57 : f32 to vector<1x16x16xf32>
    %59 = arith.mulf %58, %52 : vector<1x16x16xf32>
    %60 = arith.addf %51, %59 : vector<1x16x16xf32>
    %61 = vector.extract_strided_slice %20 {offsets = [0, 1, 0], sizes = [1, 16, 16], strides = [1, 1, 1]} : vector<1x18x16xf32> to vector<1x16x16xf32>
    %c4 = arith.constant 4 : index
    %62 = memref.load %arg2[%c4] : memref<18xf32, #tpu.memory_space<smem>>
    %63 = vector.broadcast %62 : f32 to vector<1x16x16xf32>
    %64 = arith.mulf %63, %61 : vector<1x16x16xf32>
    %65 = arith.addf %56, %64 : vector<1x16x16xf32>
    %c13 = arith.constant 13 : index
    %66 = memref.load %arg2[%c13] : memref<18xf32, #tpu.memory_space<smem>>
    %67 = vector.broadcast %66 : f32 to vector<1x16x16xf32>
    %68 = arith.mulf %67, %61 : vector<1x16x16xf32>
    %69 = arith.addf %60, %68 : vector<1x16x16xf32>
    %70 = vector.extract_strided_slice %26 {offsets = [0, 1, 0], sizes = [1, 16, 16], strides = [1, 1, 1]} : vector<1x18x16xf32> to vector<1x16x16xf32>
    %c5 = arith.constant 5 : index
    %71 = memref.load %arg2[%c5] : memref<18xf32, #tpu.memory_space<smem>>
    %72 = vector.broadcast %71 : f32 to vector<1x16x16xf32>
    %73 = arith.mulf %72, %70 : vector<1x16x16xf32>
    %74 = arith.addf %65, %73 : vector<1x16x16xf32>
    %c14 = arith.constant 14 : index
    %75 = memref.load %arg2[%c14] : memref<18xf32, #tpu.memory_space<smem>>
    %76 = vector.broadcast %75 : f32 to vector<1x16x16xf32>
    %77 = arith.mulf %76, %70 : vector<1x16x16xf32>
    %78 = arith.addf %69, %77 : vector<1x16x16xf32>
    %79 = vector.extract_strided_slice %23 {offsets = [0, 2, 0], sizes = [1, 16, 16], strides = [1, 1, 1]} : vector<1x18x16xf32> to vector<1x16x16xf32>
    %c6 = arith.constant 6 : index
    %80 = memref.load %arg2[%c6] : memref<18xf32, #tpu.memory_space<smem>>
    %81 = vector.broadcast %80 : f32 to vector<1x16x16xf32>
    %82 = arith.mulf %81, %79 : vector<1x16x16xf32>
    %83 = arith.addf %74, %82 : vector<1x16x16xf32>
    %c15 = arith.constant 15 : index
    %84 = memref.load %arg2[%c15] : memref<18xf32, #tpu.memory_space<smem>>
    %85 = vector.broadcast %84 : f32 to vector<1x16x16xf32>
    %86 = arith.mulf %85, %79 : vector<1x16x16xf32>
    %87 = arith.addf %78, %86 : vector<1x16x16xf32>
    %88 = vector.extract_strided_slice %20 {offsets = [0, 2, 0], sizes = [1, 16, 16], strides = [1, 1, 1]} : vector<1x18x16xf32> to vector<1x16x16xf32>
    %c7 = arith.constant 7 : index
    %89 = memref.load %arg2[%c7] : memref<18xf32, #tpu.memory_space<smem>>
    %90 = vector.broadcast %89 : f32 to vector<1x16x16xf32>
    %91 = arith.mulf %90, %88 : vector<1x16x16xf32>
    %92 = arith.addf %83, %91 : vector<1x16x16xf32>
    %c16 = arith.constant 16 : index
    %93 = memref.load %arg2[%c16] : memref<18xf32, #tpu.memory_space<smem>>
    %94 = vector.broadcast %93 : f32 to vector<1x16x16xf32>
    %95 = arith.mulf %94, %88 : vector<1x16x16xf32>
    %96 = arith.addf %87, %95 : vector<1x16x16xf32>
    %97 = vector.extract_strided_slice %26 {offsets = [0, 2, 0], sizes = [1, 16, 16], strides = [1, 1, 1]} : vector<1x18x16xf32> to vector<1x16x16xf32>
    %c8 = arith.constant 8 : index
    %98 = memref.load %arg2[%c8] : memref<18xf32, #tpu.memory_space<smem>>
    %99 = vector.broadcast %98 : f32 to vector<1x16x16xf32>
    %100 = arith.mulf %99, %97 : vector<1x16x16xf32>
    %101 = arith.addf %92, %100 : vector<1x16x16xf32>
    %c17 = arith.constant 17 : index
    %102 = memref.load %arg2[%c17] : memref<18xf32, #tpu.memory_space<smem>>
    %103 = vector.broadcast %102 : f32 to vector<1x16x16xf32>
    %104 = arith.mulf %103, %97 : vector<1x16x16xf32>
    %105 = arith.addf %96, %104 : vector<1x16x16xf32>
    %c0_10 = arith.constant 0 : index
    %106 = memref.load %arg3[%c0_10] : memref<2xf32, #tpu.memory_space<smem>>
    %107 = vector.broadcast %106 : f32 to vector<1x16x16xf32>
    %108 = arith.addf %101, %107 : vector<1x16x16xf32>
    %cst_11 = arith.constant 5.000000e-01 : f32
    %109 = vector.broadcast %cst_11 : f32 to vector<1x16x16xf32>
    %110 = arith.mulf %109, %108 : vector<1x16x16xf32>
    %cst_12 = arith.constant 0.707106769 : f32
    %111 = vector.broadcast %cst_12 : f32 to vector<1x16x16xf32>
    %112 = arith.mulf %108, %111 : vector<1x16x16xf32>
    %113 = math.erf %112 : vector<1x16x16xf32>
    %cst_13 = arith.constant 1.000000e+00 : f32
    %114 = vector.broadcast %cst_13 : f32 to vector<1x16x16xf32>
    %115 = arith.addf %114, %113 : vector<1x16x16xf32>
    %116 = arith.mulf %110, %115 : vector<1x16x16xf32>
    %c0_14 = arith.constant 0 : index
    %c0_15 = arith.constant 0 : index
    %c0_16 = arith.constant 0 : index
    %c0_17 = arith.constant 0 : index
    %117 = vector.load %arg6[%c0_14, %c0_15, %c0_16, %c0_17] : memref<1x2x16x16xf32, #tpu.memory_space<vmem>>, vector<1x1x16x16xf32>
    %118 = vector.shape_cast %117 : vector<1x1x16x16xf32> to vector<1x16x16xf32>
    %119 = vector.shape_cast %116 : vector<1x16x16xf32> to vector<1x1x16x16xf32>
    tpu.vector_store %arg6[%c0_14, %c0_15, %c0_16, %c0_17], %119 {strides = array<i32>} : memref<1x2x16x16xf32, #tpu.memory_space<vmem>>, vector<1x1x16x16xf32>,
    %c1_18 = arith.constant 1 : index
    %120 = memref.load %arg3[%c1_18] : memref<2xf32, #tpu.memory_space<smem>>
    %121 = vector.broadcast %120 : f32 to vector<1x16x16xf32>
    %122 = arith.addf %105, %121 : vector<1x16x16xf32>
    %cst_19 = arith.constant 5.000000e-01 : f32
    %123 = vector.broadcast %cst_19 : f32 to vector<1x16x16xf32>
    %124 = arith.mulf %123, %122 : vector<1x16x16xf32>
    %cst_20 = arith.constant 0.707106769 : f32
    %125 = vector.broadcast %cst_20 : f32 to vector<1x16x16xf32>
    %126 = arith.mulf %122, %125 : vector<1x16x16xf32>
    %127 = math.erf %126 : vector<1x16x16xf32>
    %cst_21 = arith.constant 1.000000e+00 : f32
    %128 = vector.broadcast %cst_21 : f32 to vector<1x16x16xf32>
    %129 = arith.addf %128, %127 : vector<1x16x16xf32>
    %130 = arith.mulf %124, %129 : vector<1x16x16xf32>
    %c0_22 = arith.constant 0 : index
    %c1_23 = arith.constant 1 : index
    %c0_24 = arith.constant 0 : index
    %c0_25 = arith.constant 0 : index
    %131 = vector.load %arg6[%c0_22, %c1_23, %c0_24, %c0_25] : memref<1x2x16x16xf32, #tpu.memory_space<vmem>>, vector<1x1x16x16xf32>
    %132 = vector.shape_cast %131 : vector<1x1x16x16xf32> to vector<1x16x16xf32>
    %133 = vector.shape_cast %130 : vector<1x16x16xf32> to vector<1x1x16x16xf32>
    tpu.vector_store %arg6[%c0_22, %c1_23, %c0_24, %c0_25], %133 {strides = array<i32>} : memref<1x2x16x16xf32, #tpu.memory_space<vmem>>, vector<1x1x16x16xf32>,
    return
  }
  func.func @transform_0(%arg0: i32, %arg1: i32) -> i32 {
    %c0_i32 = arith.constant 0 : i32
    %c0_i32_0 = arith.constant 0 : i32
    return %c0_i32 : i32
  }
  func.func @transform_1(%arg0: i32, %arg1: i32) -> i32 {
    %c0_i32 = arith.constant 0 : i32
    %c0_i32_0 = arith.constant 0 : i32
    return %c0_i32 : i32
  }
  func.func @transform_2(%arg0: i32, %arg1: i32) -> (i32, i32, i32, i32) {
    %c0_i32 = arith.constant 0 : i32
    %c0_i32_0 = arith.constant 0 : i32
    %c0_i32_1 = arith.constant 0 : i32
    return %arg0, %c0_i32, %arg1, %c0_i32_0 : i32, i32, i32, i32
  }
  func.func @transform_3(%arg0: i32, %arg1: i32) -> (i32, i32, i32, i32) {
    %c0_i32 = arith.constant 0 : i32
    %c0_i32_0 = arith.constant 0 : i32
    %c0_i32_1 = arith.constant 0 : i32
    return %arg0, %arg1, %c0_i32, %c0_i32_0 : i32, i32, i32, i32
  }
  func.func @transform_4(%arg0: i32, %arg1: i32) -> (i32, i32, i32, i32) {
    %c0_i32 = arith.constant 0 : i32
    %c0_i32_0 = arith.constant 0 : i32
    %c0_i32_1 = arith.constant 0 : i32
    return %arg0, %c0_i32, %arg1, %c0_i32_0 : i32, i32, i32, i32
  }
}

</mosaic_0001>

<llo_original>
// kernel: tpu_custom_call.1
$region0: #{tpu_custom_call.1}
  #allocation0 [shape = 'u32[]', space=smem, size = 0x4, offset = 0x4, fixed_abs, tag = 'smem constant byte address 0x4 - core index']
  #allocation1 [shape = 'u32[72,128]{1,0:T(1,128)}', space=vmem, size = 0x9000, scoped, tag = 'internal scratch']
  %s0 = inlined_call_operand.hbm [shape: f32[18], index: 0, kind: input, shape index: {}]
  %s1 = inlined_call_operand.hbm [shape: f32[2], index: 1, kind: input, shape index: {}]
  %s2 = inlined_call_operand.hbm [shape: f32[2,3,16,16], index: 2, kind: input, shape index: {}]
  %s3 = inlined_call_operand.hbm [shape: f32[2,1,2,16], index: 3, kind: input, shape index: {}]
  %s4 = inlined_call_operand.hbm [shape: f32[2,2,16,16], index: 4, kind: output, shape index: {}]
  %s5 = sld [smem:[#allocation0]]
  $region65: #{tpu_custom_call.1} parent=0
    _
  %s7 = ssub.s32 1, %s5
  %s8 = scalar_select 0, %s7, %s5
  $region1: #{tpu_custom_call.1} parent=0
    #allocation2 [shape = 'u8[512]{0}', space=smem, size = 0x200, scoped, tag = 'input window, operand 0, single buffered']
    #allocation3 [shape = 's32[2]{0}', space=sflag, size = 0x8, scoped, tag = 'scoped memory for tpu_custom_call.1']
    #allocation4 [shape = 's32[2]{0}', space=sflag, size = 0x8, scoped, tag = 'scoped memory for tpu_custom_call.1']
    #allocation5 [shape = 's32[2]{0}', space=sflag, size = 0x8, scoped, tag = 'scoped memory for tpu_custom_call.1']
    #allocation6 [shape = 'u8[512]{0}', space=smem, size = 0x200, scoped, tag = 'input window, operand 1, single buffered']
    #allocation7 [shape = 's32[1]{0}', space=sflag, size = 0x4, scoped, tag = 'scoped memory for tpu_custom_call.1']
    #allocation8 [shape = 'u8[49152]{0}', space=vmem, size = 0xc000, scoped, tag = 'input window, operand 2']
    #allocation9 [shape = 'u8[2048]{0}', space=vmem, size = 0x800, scoped, tag = 'input window, operand 3']
    #allocation10 [shape = 's32[2]{0}', space=sflag, size = 0x8, scoped, tag = 'scoped memory for tpu_custom_call.1']
    #allocation11 [shape = 'u8[32768]{0}', space=vmem, size = 0x8000, scoped, tag = 'output window, operand 0']
    %9 = vsyncpa [#allocation5], 0
    %10 = vsyncpa [#allocation7], 0
    %11 = vsyncpa [#allocation3], 0
    %s12 = scalar_lea.sflag [#allocation3], 1
    %13 = vsyncpa %s12, 0
    %14 = vsyncpa [#allocation10], 0
    %s15 = scalar_lea.sflag [#allocation10], 1
    %16 = vsyncpa %s15, 0
    %17 = vsyncpa [#allocation4], 0
    %s18 = scalar_lea.sflag [#allocation4], 1
    %19 = vsyncpa %s18, 0
    loop: start=0, step=1, limit=4
    $region2: #{tpu_custom_call.1} parent=1 // loop_pre_header
      _
    $region3: #{tpu_custom_call.1} parent=1 // loop_header
      %s21 = sphi 0, %s25
      %p22 = scmp.ge.s32.totalorder %s21, 4
      %s28 = sphi 0, %s40
      %s29 = sphi 0, %s36
      %s30 = sphi 0, %s28
      %s31 = sphi 0, %s29
      %s32 = sphi 0, %s30
      %s33 = sphi 0, %s31
      %s41 = sphi 0, %s41
      %s43 = sphi 0, %s41
      %s44 = sphi 0, %s43
      %s58 = sphi 0, %s44
      %s62 = sphi 0, %s62
      %s64 = sphi 0, %s62
      %s65 = sphi 0, %s64
      %s79 = sphi 0, %s65
      %s87 = sphi 0, %s89
      %s90 = sphi 0, %s87
      %s91 = sphi 0, %s90
      %s107 = sphi 0, %s91
      %s115 = sphi 0, %s117
      %s118 = sphi 0, %s115
      %s119 = sphi 0, %s118
      %s135 = sphi 0, %s119
      %s143 = sphi 0, %s145
      %s146 = sphi 0, %s143
      %s147 = sphi 0, %s146
      %s163 = sphi 0, %s147
    $region4: #{tpu_custom_call.1} parent=1 // loop_header_branch
      %24 = sbr.rel (%p22) target = $region8
    $region5: #{tpu_custom_call.1} parent=1 // loop_body
      %s26 = ssub.s32 %s21, 1
      %s27 = ssub.s32 %s21, 2
      %s34 = sadd.s32 1, %s29
      %p35 = scmp.ge.s32.totalorder %s34, 1
      %s36 = scalar_select %p35, 0, %s34
      %s37 = sadd.s32 1, %s28
      %s38 = scalar_select %p35, %s37, %s28
      %p39 = scmp.ge.s32.totalorder %s38, 2
      %s40 = scalar_select %p39, 0, %s38
      %s42 = sadd.s32 %s41, 1
      %p45 = scmp.eq.s32.totalorder %s21, 1
      %p46 = scmp.ne.s32.totalorder %s41, %s43
      %p47 = scmp.eq.s32.totalorder %s21, 0
      %p48 = por %p46, %p47
      %p49 = scmp.ne.s32.totalorder %s41, %s43
      %p50 = scmp.eq.s32.totalorder %s26, 1
      %p51 = por %p49, %p50
      %p52 = scmp.ne.s32.totalorder %s43, %s44
      %p53 = scmp.eq.s32.totalorder %s26, 0
      %p54 = por %p52, %p53
      %p55 = scmp.ne.s32.totalorder %s43, %s44
      %p56 = scmp.eq.s32.totalorder %s27, 1
      %p57 = por %p55, %p56
      %p59 = scmp.ne.s32.totalorder %s44, %s58
      %p60 = scmp.eq.s32.totalorder %s27, 0
      %p61 = por %p59, %p60
      %s63 = sadd.s32 %s62, 1
      %p66 = scmp.eq.s32.totalorder %s21, 1
      %p67 = scmp.ne.s32.totalorder %s62, %s64
      %p68 = scmp.eq.s32.totalorder %s21, 0
      %p69 = por %p67, %p68
      %p70 = scmp.ne.s32.totalorder %s62, %s64
      %p71 = scmp.eq.s32.totalorder %s26, 1
      %p72 = por %p70, %p71
      %p73 = scmp.ne.s32.totalorder %s64, %s65
      %p74 = scmp.eq.s32.totalorder %s26, 0
      %p75 = por %p73, %p74
      %p76 = scmp.ne.s32.totalorder %s64, %s65
      %p77 = scmp.eq.s32.totalorder %s27, 1
      %p78 = por %p76, %p77
      %p80 = scmp.ne.s32.totalorder %s65, %s79
      %p81 = scmp.eq.s32.totalorder %s27, 0
      %p82 = por %p80, %p81
      %s83 = ssub.s32 %s28, %s40
      %s84 = ssub.s32 %s29, %s36
      %s85 = sor.u32 %s83, %s84
      %p86 = scmp.eq.s32.totalorder %s85, 0
      %s88 = sadd.s32 %s87, 1
      %s89 = scalar_select %p86, %s87, %s88
      %p92 = pneg %p86
      %p93 = scmp.eq.s32.totalorder %s21, 1
      %p94 = por %p92, %p93
      %p95 = scmp.ne.s32.totalorder %s87, %s90
      %p96 = scmp.eq.s32.totalorder %s21, 0
      %p97 = por %p95, %p96
      %p98 = scmp.ne.s32.totalorder %s87, %s90
      %p99 = scmp.eq.s32.totalorder %s26, 1
      %p100 = por %p98, %p99
      %p101 = scmp.ne.s32.totalorder %s90, %s91
      %p102 = scmp.eq.s32.totalorder %s26, 0
      %p103 = por %p101, %p102
      %p104 = scmp.ne.s32.totalorder %s90, %s91
      %p105 = scmp.eq.s32.totalorder %s27, 1
      %p106 = por %p104, %p105
      %p108 = scmp.ne.s32.totalorder %s91, %s107
      %p109 = scmp.eq.s32.totalorder %s27, 0
      %p110 = por %p108, %p109
      %s111 = ssub.s32 %s28, %s40
      %s112 = ssub.s32 %s29, %s36
      %s113 = sor.u32 %s111, %s112
      %p114 = scmp.eq.s32.totalorder %s113, 0
      %s116 = sadd.s32 %s115, 1
      %s117 = scalar_select %p114, %s115, %s116
      %p120 = pneg %p114
      %p121 = scmp.eq.s32.totalorder %s21, 1
      %p122 = por %p120, %p121
      %p123 = scmp.ne.s32.totalorder %s115, %s118
      %p124 = scmp.eq.s32.totalorder %s21, 0
      %p125 = por %p123, %p124
      %p126 = scmp.ne.s32.totalorder %s115, %s118
      %p127 = scmp.eq.s32.totalorder %s26, 1
      %p128 = por %p126, %p127
      %p129 = scmp.ne.s32.totalorder %s118, %s119
      %p130 = scmp.eq.s32.totalorder %s26, 0
      %p131 = por %p129, %p130
      %p132 = scmp.ne.s32.totalorder %s118, %s119
      %p133 = scmp.eq.s32.totalorder %s27, 1
      %p134 = por %p132, %p133
      %p136 = scmp.ne.s32.totalorder %s119, %s135
      %p137 = scmp.eq.s32.totalorder %s27, 0
      %p138 = por %p136, %p137
      %s139 = ssub.s32 %s28, %s40
      %s140 = ssub.s32 %s29, %s36
      %s141 = sor.u32 %s139, %s140
      %p142 = scmp.eq.s32.totalorder %s141, 0
      %s144 = sadd.s32 %s143, 1
      %s145 = scalar_select %p142, %s143, %s144
      %p148 = pneg %p142
      %p149 = scmp.eq.s32.totalorder %s21, 1
      %p150 = por %p148, %p149
      %p151 = scmp.ne.s32.totalorder %s143, %s146
      %p152 = scmp.eq.s32.totalorder %s21, 0
      %p153 = por %p151, %p152
      %p154 = scmp.ne.s32.totalorder %s143, %s146
      %p155 = scmp.eq.s32.totalorder %s26, 1
      %p156 = por %p154, %p155
      %p157 = scmp.ne.s32.totalorder %s146, %s147
      %p158 = scmp.eq.s32.totalorder %s26, 0
      %p159 = por %p157, %p158
      %p160 = scmp.ne.s32.totalorder %s146, %s147
      %p161 = scmp.eq.s32.totalorder %s27, 1
      %p162 = por %p160, %p161
      %p164 = scmp.ne.s32.totalorder %s147, %s163
      %p165 = scmp.eq.s32.totalorder %s27, 0
      %p166 = por %p164, %p165
      %p167 = scmp.le.s32.totalorder 1, %s21
      %p168 = scmp.lt.s32.totalorder %s21, 3
      %p169 = pnand %p167, %p168
      %p170 = pneg %p169
      // Predicated region
      $region9: #{tpu_custom_call.1} parent=5 // pred_check
        _
      $region10: #{tpu_custom_call.1} parent=5 // pred_check_branch
        %172 = sbr.rel (%p169) target = $region12
      $region11: #{tpu_custom_call.1} parent=5 // pred_region
        %s173 = ssub.s32 %s21, 1
        // Predicated region
        $region13: #{tpu_custom_call.1} parent=11 // pred_check
          %p174 = pneg %p54
        $region14: #{tpu_custom_call.1} parent=11 // pred_check_branch
          %176 = sbr.rel (%p174) target = $region16
        $region15: #{tpu_custom_call.1} parent=11 // pred_region
          %178 = vsyncadd [#allocation5], 0
          %s180 = sshll.u32 %s0, 4
          %s181 = int_to_ptr.hbm [resolvable:$true] %s180
          %183 = dma.hbm_to_smem %s181, 16, [#allocation2], [#allocation5]
        $region16: #{tpu_custom_call.1} parent=11 // pred_fallthru
          _
        // Predicated region
        $region17: #{tpu_custom_call.1} parent=11 // pred_check
          %p184 = pneg %p75
        $region18: #{tpu_custom_call.1} parent=11 // pred_check_branch
          %186 = sbr.rel (%p184) target = $region20
        $region19: #{tpu_custom_call.1} parent=11 // pred_region
          %188 = vsyncadd [#allocation7], 0
          %s190 = sshll.u32 %s1, 4
          %s191 = int_to_ptr.hbm [resolvable:$true] %s190
          %193 = dma.hbm_to_smem %s191, 16, [#allocation6], [#allocation7]
        $region20: #{tpu_custom_call.1} parent=11 // pred_fallthru
          _
      $region12: #{tpu_custom_call.1} parent=5 // pred_fallthru
        _
      %p194 = scmp.lt.s32.totalorder %s21, 2
      // Predicated region
      $region21: #{tpu_custom_call.1} parent=5 // pred_check
        %p195 = pneg %p194
      $region22: #{tpu_custom_call.1} parent=5 // pred_check_branch
        %197 = sbr.rel (%p195) target = $region24
      $region23: #{tpu_custom_call.1} parent=5 // pred_region
        // Predicated region
        $region25: #{tpu_custom_call.1} parent=23 // pred_check
          %p198 = pneg %p97
        $region26: #{tpu_custom_call.1} parent=23 // pred_check_branch
          %200 = sbr.rel (%p198) target = $region28
        $region27: #{tpu_custom_call.1} parent=23 // pred_region
          %s201 = sand.u32 %s87, 1
          %s202 = scalar_lea.sflag [#allocation3], %s201
          %s203 = sand.u32 %s87, 1
          %s204 = smul.addr %s203, 48
          %s205 = scalar_lea.vmem [#allocation8], %s204
          %s206 = smul.u32 2, %s29
          %208 = vsyncadd %s202, 0
          %s209 = smul.addr %s28, 6
          %s210 = sadd.s32 %s206, %s209
          %s211 = smul.addr %s210, 8
          %s212 = scalar_lea.hbm %s2, %s211
          %s213 = sshll.u32 %s212, 4
          %s214 = int_to_ptr.hbm [resolvable:$true] %s213
          %s215 = sshll.u32 %s205, 4
          %s216 = int_to_ptr.vmem [resolvable:$true] %s215
          %221 = dma.hbm_to_vmem [thread:$0]  %s214, 768, %s216, %s202, 128, 128, 8
        $region28: #{tpu_custom_call.1} parent=23 // pred_fallthru
          _
        // Predicated region
        $region29: #{tpu_custom_call.1} parent=23 // pred_check
          %p222 = pneg %p125
        $region30: #{tpu_custom_call.1} parent=23 // pred_check_branch
          %224 = sbr.rel (%p222) target = $region32
        $region31: #{tpu_custom_call.1} parent=23 // pred_region
          %s225 = sand.u32 %s115, 1
          %s226 = scalar_lea.sflag [#allocation10], %s225
          %s227 = sand.u32 %s115, 1
          %s228 = smul.addr %s227, 2
          %s229 = scalar_lea.vmem [#allocation9], %s228
          %231 = vsyncadd %s226, 0
          %s232 = sadd.s32 %s29, %s28
          %s233 = smul.addr %s232, 2
          %s234 = scalar_lea.hbm %s3, %s233
          %s236 = sshll.u32 %s234, 4
          %s237 = int_to_ptr.hbm [resolvable:$true] %s236
          %s238 = sshll.u32 %s229, 4
          %s239 = int_to_ptr.vmem [resolvable:$true] %s238
          %241 = dma.hbm_to_vmem [thread:$0]  %s237, 32, %s239, %s226
        $region32: #{tpu_custom_call.1} parent=23 // pred_fallthru
          _
      $region24: #{tpu_custom_call.1} parent=5 // pred_fallthru
        _
      %p242 = scmp.le.s32.totalorder 1, %s21
      %p243 = scmp.lt.s32.totalorder %s21, 3
      %p244 = pnand %p242, %p243
      %p245 = pneg %p244
      // Predicated region
      $region33: #{tpu_custom_call.1} parent=5 // pred_check
        _
      $region34: #{tpu_custom_call.1} parent=5 // pred_check_branch
        %247 = sbr.rel (%p244) target = $region36
      $region35: #{tpu_custom_call.1} parent=5 // pred_region
        %s248 = ssub.s32 %s21, 1
        // Predicated region
        $region37: #{tpu_custom_call.1} parent=35 // pred_check
          %p249 = pneg %p54
        $region38: #{tpu_custom_call.1} parent=35 // pred_check_branch
          %251 = sbr.rel (%p249) target = $region40
        $region39: #{tpu_custom_call.1} parent=35 // pred_region
          %253 = dma.done [#allocation5], 16
        $region40: #{tpu_custom_call.1} parent=35 // pred_fallthru
          _
        // Predicated region
        $region41: #{tpu_custom_call.1} parent=35 // pred_check
          %p254 = pneg %p75
        $region42: #{tpu_custom_call.1} parent=35 // pred_check_branch
          %256 = sbr.rel (%p254) target = $region44
        $region43: #{tpu_custom_call.1} parent=35 // pred_region
          %258 = dma.done [#allocation7], 16
        $region44: #{tpu_custom_call.1} parent=35 // pred_fallthru
          _
        %s259 = sand.u32 %s90, 1
        %s260 = scalar_lea.sflag [#allocation3], %s259
        %s261 = sand.u32 %s90, 1
        %s262 = smul.addr %s261, 48
        %s263 = scalar_lea.vmem [#allocation8], %s262
        // Predicated region
        $region45: #{tpu_custom_call.1} parent=35 // pred_check
          %p264 = pneg %p103
        $region46: #{tpu_custom_call.1} parent=35 // pred_check_branch
          %266 = sbr.rel (%p264) target = $region48
        $region47: #{tpu_custom_call.1} parent=35 // pred_region
          %268 = dma.done %s260, 768
        $region48: #{tpu_custom_call.1} parent=35 // pred_fallthru
          _
        %s269 = sand.u32 %s118, 1
        %s270 = scalar_lea.sflag [#allocation10], %s269
        %s271 = sand.u32 %s118, 1
        %s272 = smul.addr %s271, 2
        %s273 = scalar_lea.vmem [#allocation9], %s272
        // Predicated region
        $region49: #{tpu_custom_call.1} parent=35 // pred_check
          %p274 = pneg %p131
        $region50: #{tpu_custom_call.1} parent=35 // pred_check_branch
          %276 = sbr.rel (%p274) target = $region52
        $region51: #{tpu_custom_call.1} parent=35 // pred_region
          %278 = dma.done %s270, 32
        $region52: #{tpu_custom_call.1} parent=35 // pred_fallthru
          _
        %279 = sfence
        %p280 = pneg %p54
        %p281 = pneg %p51
        %p282 = pneg %p75
        %p283 = pneg %p72
        %s284 = sand.u32 %s90, 1
        %s285 = scalar_lea.sflag [#allocation3], %s284
        %s286 = sand.u32 %s90, 1
        %s287 = smul.addr %s286, 48
        %s288 = scalar_lea.vmem [#allocation8], %s287
        %p289 = pneg %p103
        %p290 = pneg %p100
        %s291 = sand.u32 %s118, 1
        %s292 = scalar_lea.sflag [#allocation10], %s291
        %s293 = sand.u32 %s118, 1
        %s294 = smul.addr %s293, 2
        %s295 = scalar_lea.vmem [#allocation9], %s294
        %p296 = pneg %p131
        %p297 = pneg %p128
        %p298 = pneg %p159
        %p299 = pneg %p156
        %s300 = sand.u32 %s146, 1
        %s301 = scalar_lea.sflag [#allocation4], %s300
        %s302 = sand.u32 %s146, 1
        %s303 = smul.addr %s302, 32
        %s304 = scalar_lea.vmem [#allocation11], %s303
        %s305 = smul.u32 2, %s31
        %s306 = smul.u32 2, %s31
        %v307 = vld [vmem:[%s263] sm:$0xff]
        %v308 = vld [vmem:[%s263 + $0x8] sm:$0xff]
        %v309 = vld [vmem:[%s263 + $0x10] sm:$0xff]
        %v310 = vld [vmem:[%s263 + $0x18] sm:$0xff]
        %v311 = vld [vmem:[%s263 + $0x20] sm:$0xff]
        %v312 = vld [vmem:[%s263 + $0x28] sm:$0xff]
        %v313 = vld [vmem:[%s273] sm:$0x3]
        %v314 = vmul.f32 %v307, 0.114
        %v315 = vmul.f32 %v308, 0.114
        %v316 = vmul.f32 %v309, 0.587
        %v317 = vmul.f32 %v310, 0.587
        %v318 = vadd.f32 %v314, %v316
        %v319 = vadd.f32 %v315, %v317
        %v320 = vmul.f32 %v311, 0.299
        %v321 = vmul.f32 %v312, 0.299
        %v322 = vadd.f32 %v318, %v320
        %v323 = vadd.f32 %v319, %v321
        %vm326 = vcmask 1040384
        %v327 = vrot.slane %v322, 7
        %v328 = vrot.slane %v323, 7
        %v329 = vsel %vm326, %v327, %v328
        %v333 = vsel %vm326, %v313, %v327
        %v334 = vsel %vm326, %v328, %v313
        %337 = vrot.lane.b32.xlu0 %v333, 127
        %v338 = vpop.permute.xlu0 %337
        %339 = vrot.lane.b32.xlu0 %v329, 127
        %v340 = vpop.permute.xlu0 %339
        %341 = vrot.lane.b32.xlu0 %v334, 127
        %v342 = vpop.permute.xlu0 %341
        %346 = vrot.lane.b32.xlu0 %v333, 1
        %v347 = vpop.permute.xlu0 %346
        %348 = vrot.lane.b32.xlu0 %v329, 1
        %v349 = vpop.permute.xlu0 %348
        %350 = vrot.lane.b32.xlu0 %v334, 1
        %v351 = vpop.permute.xlu0 %350
        %vm355 = vcmask 7168
        %v356 = vsel %vm355, %v338, %v347
        %v357 = vsel %vm355, %v340, %v349
        %v358 = vsel %vm355, %v342, %v351
        %vm359 = vcmask 121856
        %v360 = vsel %vm359, %v338, %v347
        %v361 = vsel %vm359, %v340, %v349
        %v362 = vsel %vm359, %v342, %v351
        %s363 = sld [smem:[#allocation2]]
        %v364 = vstv %s363
        %v365 = vmul.f32 %v364, %v356
        %v366 = vmul.f32 %v364, %v357
        %s367 = sld [smem:[#allocation2 + $0x9]]
        %v368 = vstv %s367
        %v369 = vmul.f32 %v368, %v356
        %v370 = vmul.f32 %v368, %v357
        %s371 = sld [smem:[#allocation2 + $0x1]]
        %v372 = vstv %s371
        %v373 = vmul.f32 %v372, %v333
        %v374 = vmul.f32 %v372, %v329
        %v375 = vadd.f32 %v365, %v373
        %v376 = vadd.f32 %v366, %v374
        %s377 = sld [smem:[#allocation2 + $0xa]]
        %v378 = vstv %s377
        %v379 = vmul.f32 %v378, %v333
        %v380 = vmul.f32 %v378, %v329
        %v381 = vadd.f32 %v369, %v379
        %v382 = vadd.f32 %v370, %v380
        %s383 = sld [smem:[#allocation2 + $0x2]]
        %v384 = vstv %s383
        %v385 = vmul.f32 %v384, %v360
        %v386 = vmul.f32 %v384, %v361
        %v387 = vadd.f32 %v375, %v385
        %v388 = vadd.f32 %v376, %v386
        %s389 = sld [smem:[#allocation2 + $0xb]]
        %v390 = vstv %s389
        %v391 = vmul.f32 %v390, %v360
        %v392 = vmul.f32 %v390, %v361
        %v393 = vadd.f32 %v381, %v391
        %v394 = vadd.f32 %v382, %v392
        %s395 = sld [smem:[#allocation2 + $0x3]]
        %v396 = vstv %s395
        %v397 = vmul.f32 %v396, %v356
        %v398 = vmul.f32 %v396, %v357
        %v399 = vmul.f32 %v396, %v358
        %vm403 = vcmask 1046528
        %v404 = vrot.slane %v397, 1
        %v405 = vrot.slane %v398, 1
        %v406 = vsel %vm403, %v404, %v405
        %v407 = vrot.slane %v399, 1
        %v408 = vsel %vm403, %v405, %v407
        %v411 = vadd.f32 %v387, %v406
        %v412 = vadd.f32 %v388, %v408
        %s413 = sld [smem:[#allocation2 + $0xc]]
        %v414 = vstv %s413
        %v415 = vmul.f32 %v414, %v356
        %v416 = vmul.f32 %v414, %v357
        %v417 = vmul.f32 %v414, %v358
        %v421 = vrot.slane %v415, 1
        %v422 = vrot.slane %v416, 1
        %v423 = vsel %vm403, %v421, %v422
        %v424 = vrot.slane %v417, 1
        %v425 = vsel %vm403, %v422, %v424
        %v428 = vadd.f32 %v393, %v423
        %v429 = vadd.f32 %v394, %v425
        %s430 = sld [smem:[#allocation2 + $0x4]]
        %v431 = vstv %s430
        %v432 = vmul.f32 %v431, %v333
        %v433 = vmul.f32 %v431, %v329
        %v434 = vmul.f32 %v431, %v334
        %v438 = vrot.slane %v432, 1
        %v439 = vrot.slane %v433, 1
        %v440 = vsel %vm403, %v438, %v439
        %v441 = vrot.slane %v434, 1
        %v442 = vsel %vm403, %v439, %v441
        %v445 = vadd.f32 %v411, %v440
        %v446 = vadd.f32 %v412, %v442
        %s447 = sld [smem:[#allocation2 + $0xd]]
        %v448 = vstv %s447
        %v449 = vmul.f32 %v448, %v333
        %v450 = vmul.f32 %v448, %v329
        %v451 = vmul.f32 %v448, %v334
        %v455 = vrot.slane %v449, 1
        %v456 = vrot.slane %v450, 1
        %v457 = vsel %vm403, %v455, %v456
        %v458 = vrot.slane %v451, 1
        %v459 = vsel %vm403, %v456, %v458
        %v462 = vadd.f32 %v428, %v457
        %v463 = vadd.f32 %v429, %v459
        %s464 = sld [smem:[#allocation2 + $0x5]]
        %v465 = vstv %s464
        %v466 = vmul.f32 %v465, %v360
        %v467 = vmul.f32 %v465, %v361
        %v468 = vmul.f32 %v465, %v362
        %v472 = vrot.slane %v466, 1
        %v473 = vrot.slane %v467, 1
        %v474 = vsel %vm403, %v472, %v473
        %v475 = vrot.slane %v468, 1
        %v476 = vsel %vm403, %v473, %v475
        %v479 = vadd.f32 %v445, %v474
        %v480 = vadd.f32 %v446, %v476
        %s481 = sld [smem:[#allocation2 + $0xe]]
        %v482 = vstv %s481
        %v483 = vmul.f32 %v482, %v360
        %v484 = vmul.f32 %v482, %v361
        %v485 = vmul.f32 %v482, %v362
        %v489 = vrot.slane %v483, 1
        %v490 = vrot.slane %v484, 1
        %v491 = vsel %vm403, %v489, %v490
        %v492 = vrot.slane %v485, 1
        %v493 = vsel %vm403, %v490, %v492
        %v496 = vadd.f32 %v462, %v491
        %v497 = vadd.f32 %v463, %v493
        %s498 = sld [smem:[#allocation2 + $0x6]]
        %v499 = vstv %s498
        %v500 = vmul.f32 %v499, %v356
        %v501 = vmul.f32 %v499, %v357
        %v502 = vmul.f32 %v499, %v358
        %vm506 = vcmask 1045504
        %v507 = vrot.slane %v500, 2
        %v508 = vrot.slane %v501, 2
        %v509 = vsel %vm506, %v507, %v508
        %v510 = vrot.slane %v502, 2
        %v511 = vsel %vm506, %v508, %v510
        %v514 = vadd.f32 %v479, %v509
        %v515 = vadd.f32 %v480, %v511
        %s516 = sld [smem:[#allocation2 + $0xf]]
        %v517 = vstv %s516
        %v518 = vmul.f32 %v517, %v356
        %v519 = vmul.f32 %v517, %v357
        %v520 = vmul.f32 %v517, %v358
        %v524 = vrot.slane %v518, 2
        %v525 = vrot.slane %v519, 2
        %v526 = vsel %vm506, %v524, %v525
        %v527 = vrot.slane %v520, 2
        %v528 = vsel %vm506, %v525, %v527
        %v531 = vadd.f32 %v496, %v526
        %v532 = vadd.f32 %v497, %v528
        %s533 = sld [smem:[#allocation2 + $0x7]]
        %v534 = vstv %s533
        %v535 = vmul.f32 %v534, %v333
        %v536 = vmul.f32 %v534, %v329
        %v537 = vmul.f32 %v534, %v334
        %v541 = vrot.slane %v535, 2
        %v542 = vrot.slane %v536, 2
        %v543 = vsel %vm506, %v541, %v542
        %v544 = vrot.slane %v537, 2
        %v545 = vsel %vm506, %v542, %v544
        %v548 = vadd.f32 %v514, %v543
        %v549 = vadd.f32 %v515, %v545
        %s550 = sld [smem:[#allocation2 + $0x10]]
        %v551 = vstv %s550
        %v552 = vmul.f32 %v551, %v333
        %v553 = vmul.f32 %v551, %v329
        %v554 = vmul.f32 %v551, %v334
        %v558 = vrot.slane %v552, 2
        %v559 = vrot.slane %v553, 2
        %v560 = vsel %vm506, %v558, %v559
        %v561 = vrot.slane %v554, 2
        %v562 = vsel %vm506, %v559, %v561
        %v565 = vadd.f32 %v531, %v560
        %v566 = vadd.f32 %v532, %v562
        %s567 = sld [smem:[#allocation2 + $0x8]]
        %v568 = vstv %s567
        %v569 = vmul.f32 %v568, %v360
        %v570 = vmul.f32 %v568, %v361
        %v571 = vmul.f32 %v568, %v362
        %v575 = vrot.slane %v569, 2
        %v576 = vrot.slane %v570, 2
        %v577 = vsel %vm506, %v575, %v576
        %v578 = vrot.slane %v571, 2
        %v579 = vsel %vm506, %v576, %v578
        %v582 = vadd.f32 %v548, %v577
        %v583 = vadd.f32 %v549, %v579
        %s584 = sld [smem:[#allocation2 + $0x11]]
        %v585 = vstv %s584
        %v586 = vmul.f32 %v585, %v360
        %v587 = vmul.f32 %v585, %v361
        %v588 = vmul.f32 %v585, %v362
        %v592 = vrot.slane %v586, 2
        %v593 = vrot.slane %v587, 2
        %v594 = vsel %vm506, %v592, %v593
        %v595 = vrot.slane %v588, 2
        %v596 = vsel %vm506, %v593, %v595
        %v599 = vadd.f32 %v565, %v594
        %v600 = vadd.f32 %v566, %v596
        %s601 = sld [smem:[#allocation6]]
        %v602 = vstv %s601
        %v603 = vadd.f32 %v582, %v602
        %v604 = vadd.f32 %v583, %v602
        %v605 = vmul.f32 %v603, 0.5
        %v606 = vmul.f32 %v604, 0.5
        %v607 = vmul.f32 %v603, 0.70710677
        %v608 = vmul.f32 %v604, 0.70710677
        %v609 = vmul.f32 %v607, %v607
        %v610 = vmin.f32 16.0, %v609
        %v611 = vmul.f32 %v610, 2.1237322e-06
        %v612 = vadd.f32 %v611, 0.00028619796
        %v613 = vmul.f32 %v610, %v612
        %v614 = vadd.f32 %v613, 0.0036580483
        %v615 = vmul.f32 %v610, %v614
        %v616 = vadd.f32 %v615, 0.05243302
        %v617 = vmul.f32 %v610, %v616
        %v618 = vadd.f32 %v617, 0.18741608
        %v619 = vmul.f32 %v610, %v618
        %v620 = vadd.f32 %v619, 1.1283791
        %v621 = vmul.f32 %v607, %v620
        %v622 = vmul.f32 %v610, 3.8918573e-05
        %v623 = vadd.f32 %v622, 0.001143296
        %v624 = vmul.f32 %v610, %v623
        %v625 = vadd.f32 %v624, 0.014752088
        %v626 = vmul.f32 %v610, %v625
        %v627 = vadd.f32 %v626, 0.112945676
        %v628 = vmul.f32 %v610, %v627
        %v629 = vadd.f32 %v628, 0.4994258
        %v630 = vmul.f32 %v610, %v629
        %v631 = vadd.f32 %v630, 1.0
        %v632 = vrcp.pop %v631
        %v633 = vmul.f32 %v631, %v632
        %v634 = vsub.f32 1.0, %v633
        %v635 = vmul.f32 %v632, %v634
        %v636 = vadd.f32 %v632, %v635
        %vm637 = vweird.f32 %v631
        %vm638 = vweird.f32 %v632
        %vm639 = vmor %vm637, %vm638
        %v640 = vsel %vm639, %v632, %v636
        %v641 = vand.u32 2147483647, %v631
        %vm642 = vcmp.eq.f32.partialorder %v641, 8.507059e+37
        %v643 = vand.u32 %v631, 2147483648
        %v644 = vor.u32 1.1754944e-38, %v643
        %v645 = vsel %vm642, %v644, %v640
        %v646 = vmul.f32 %v621, %v645
        %v647 = vmin.f32 %v646, 1.0
        %v648 = vmax.f32 %v647, -1.0
        %v649 = vmul.f32 %v608, %v608
        %v650 = vmin.f32 16.0, %v649
        %v651 = vmul.f32 %v650, 2.1237322e-06
        %v652 = vadd.f32 %v651, 0.00028619796
        %v653 = vmul.f32 %v650, %v652
        %v654 = vadd.f32 %v653, 0.0036580483
        %v655 = vmul.f32 %v650, %v654
        %v656 = vadd.f32 %v655, 0.05243302
        %v657 = vmul.f32 %v650, %v656
        %v658 = vadd.f32 %v657, 0.18741608
        %v659 = vmul.f32 %v650, %v658
        %v660 = vadd.f32 %v659, 1.1283791
        %v661 = vmul.f32 %v608, %v660
        %v662 = vmul.f32 %v650, 3.8918573e-05
        %v663 = vadd.f32 %v662, 0.001143296
        %v664 = vmul.f32 %v650, %v663
        %v665 = vadd.f32 %v664, 0.014752088
        %v666 = vmul.f32 %v650, %v665
        %v667 = vadd.f32 %v666, 0.112945676
        %v668 = vmul.f32 %v650, %v667
        %v669 = vadd.f32 %v668, 0.4994258
        %v670 = vmul.f32 %v650, %v669
        %v671 = vadd.f32 %v670, 1.0
        %v672 = vrcp.pop %v671
        %v673 = vmul.f32 %v671, %v672
        %v674 = vsub.f32 1.0, %v673
        %v675 = vmul.f32 %v672, %v674
        %v676 = vadd.f32 %v672, %v675
        %vm677 = vweird.f32 %v671
        %vm678 = vweird.f32 %v672
        %vm679 = vmor %vm677, %vm678
        %v680 = vsel %vm679, %v672, %v676
        %v681 = vand.u32 2147483647, %v671
        %vm682 = vcmp.eq.f32.partialorder %v681, 8.507059e+37
        %v683 = vand.u32 %v671, 2147483648
        %v684 = vor.u32 1.1754944e-38, %v683
        %v685 = vsel %vm682, %v684, %v680
        %v686 = vmul.f32 %v661, %v685
        %v687 = vmin.f32 %v686, 1.0
        %v688 = vmax.f32 %v687, -1.0
        %v689 = vadd.f32 %v648, 1.0
        %v690 = vadd.f32 %v688, 1.0
        %v691 = vmul.f32 %v605, %v689
        %v692 = vmul.f32 %v606, %v690
        %vm693 = vcmask 130048
        %694 = vst.msk [vmem:[%s304] sm:$0xff] %vm693, %v691
        %695 = vst.msk [vmem:[%s304 + $0x8] sm:$0xff] %vm693, %v692
        %s696 = sld [smem:[#allocation6 + $0x1]]
        %v697 = vstv %s696
        %v698 = vadd.f32 %v599, %v697
        %v699 = vadd.f32 %v600, %v697
        %v700 = vmul.f32 %v698, 0.5
        %v701 = vmul.f32 %v699, 0.5
        %v702 = vmul.f32 %v698, 0.70710677
        %v703 = vmul.f32 %v699, 0.70710677
        %v704 = vmul.f32 %v702, %v702
        %v705 = vmin.f32 16.0, %v704
        %v706 = vmul.f32 %v705, 2.1237322e-06
        %v707 = vadd.f32 %v706, 0.00028619796
        %v708 = vmul.f32 %v705, %v707
        %v709 = vadd.f32 %v708, 0.0036580483
        %v710 = vmul.f32 %v705, %v709
        %v711 = vadd.f32 %v710, 0.05243302
        %v712 = vmul.f32 %v705, %v711
        %v713 = vadd.f32 %v712, 0.18741608
        %v714 = vmul.f32 %v705, %v713
        %v715 = vadd.f32 %v714, 1.1283791
        %v716 = vmul.f32 %v702, %v715
        %v717 = vmul.f32 %v705, 3.8918573e-05
        %v718 = vadd.f32 %v717, 0.001143296
        %v719 = vmul.f32 %v705, %v718
        %v720 = vadd.f32 %v719, 0.014752088
        %v721 = vmul.f32 %v705, %v720
        %v722 = vadd.f32 %v721, 0.112945676
        %v723 = vmul.f32 %v705, %v722
        %v724 = vadd.f32 %v723, 0.4994258
        %v725 = vmul.f32 %v705, %v724
        %v726 = vadd.f32 %v725, 1.0
        %v727 = vrcp.pop %v726
        %v728 = vmul.f32 %v726, %v727
        %v729 = vsub.f32 1.0, %v728
        %v730 = vmul.f32 %v727, %v729
        %v731 = vadd.f32 %v727, %v730
        %vm732 = vweird.f32 %v726
        %vm733 = vweird.f32 %v727
        %vm734 = vmor %vm732, %vm733
        %v735 = vsel %vm734, %v727, %v731
        %v736 = vand.u32 2147483647, %v726
        %vm737 = vcmp.eq.f32.partialorder %v736, 8.507059e+37
        %v738 = vand.u32 %v726, 2147483648
        %v739 = vor.u32 1.1754944e-38, %v738
        %v740 = vsel %vm737, %v739, %v735
        %v741 = vmul.f32 %v716, %v740
        %v742 = vmin.f32 %v741, 1.0
        %v743 = vmax.f32 %v742, -1.0
        %v744 = vmul.f32 %v703, %v703
        %v745 = vmin.f32 16.0, %v744
        %v746 = vmul.f32 %v745, 2.1237322e-06
        %v747 = vadd.f32 %v746, 0.00028619796
        %v748 = vmul.f32 %v745, %v747
        %v749 = vadd.f32 %v748, 0.0036580483
        %v750 = vmul.f32 %v745, %v749
        %v751 = vadd.f32 %v750, 0.05243302
        %v752 = vmul.f32 %v745, %v751
        %v753 = vadd.f32 %v752, 0.18741608
        %v754 = vmul.f32 %v745, %v753
        %v755 = vadd.f32 %v754, 1.1283791
        %v756 = vmul.f32 %v703, %v755
        %v757 = vmul.f32 %v745, 3.8918573e-05
        %v758 = vadd.f32 %v757, 0.001143296
        %v759 = vmul.f32 %v745, %v758
        %v760 = vadd.f32 %v759, 0.014752088
        %v761 = vmul.f32 %v745, %v760
        %v762 = vadd.f32 %v761, 0.112945676
        %v763 = vmul.f32 %v745, %v762
        %v764 = vadd.f32 %v763, 0.4994258
        %v765 = vmul.f32 %v745, %v764
        %v766 = vadd.f32 %v765, 1.0
        %v767 = vrcp.pop %v766
        %v768 = vmul.f32 %v766, %v767
        %v769 = vsub.f32 1.0, %v768
        %v770 = vmul.f32 %v767, %v769
        %v771 = vadd.f32 %v767, %v770
        %vm772 = vweird.f32 %v766
        %vm773 = vweird.f32 %v767
        %vm774 = vmor %vm772, %vm773
        %v775 = vsel %vm774, %v767, %v771
        %v776 = vand.u32 2147483647, %v766
        %vm777 = vcmp.eq.f32.partialorder %v776, 8.507059e+37
        %v778 = vand.u32 %v766, 2147483648
        %v779 = vor.u32 1.1754944e-38, %v778
        %v780 = vsel %vm777, %v779, %v775
        %v781 = vmul.f32 %v756, %v780
        %v782 = vmin.f32 %v781, 1.0
        %v783 = vmax.f32 %v782, -1.0
        %v784 = vadd.f32 %v743, 1.0
        %v785 = vadd.f32 %v783, 1.0
        %v786 = vmul.f32 %v700, %v784
        %v787 = vmul.f32 %v701, %v785
        %s788 = scalar_lea.vmem %s304, 16 [#allocation11]
        %789 = vst.msk [vmem:[%s788] sm:$0xff] %vm693, %v786
        %790 = vst.msk [vmem:[%s788 + $0x8] sm:$0xff] %vm693, %v787
        %s791 = sand.u32 %s146, 1
        %s792 = scalar_lea.sflag [#allocation4], %s791
        %s793 = sand.u32 %s146, 1
        %s794 = smul.addr %s793, 32
        %s795 = scalar_lea.vmem [#allocation11], %s794
        // Predicated region
        $region53: #{tpu_custom_call.1} parent=35 // pred_check
          %p796 = pneg %p156
        $region54: #{tpu_custom_call.1} parent=35 // pred_check_branch
          %798 = sbr.rel (%p796) target = $region56
        $region55: #{tpu_custom_call.1} parent=35 // pred_region
          %s799 = smul.u32 2, %s31
          %801 = vsyncadd %s792, 0
          %s802 = smul.addr %s30, 4
          %s803 = sadd.s32 %s799, %s802
          %s804 = smul.addr %s803, 8
          %s805 = scalar_lea.hbm %s4, %s804
          %s806 = sshll.u32 %s795, 4
          %s807 = int_to_ptr.vmem [resolvable:$true] %s806
          %s808 = sshll.u32 %s805, 4
          %s809 = int_to_ptr.hbm [resolvable:$true] %s808
          %814 = dma.vmem_to_hbm [thread:$0]  %s807, 512, %s809, %s792, 128, 128, 8
        $region56: #{tpu_custom_call.1} parent=35 // pred_fallthru
          _
      $region36: #{tpu_custom_call.1} parent=5 // pred_fallthru
        _
      %p815 = scmp.le.s32.totalorder 2, %s21
      // Predicated region
      $region57: #{tpu_custom_call.1} parent=5 // pred_check
        %p816 = pneg %p815
      $region58: #{tpu_custom_call.1} parent=5 // pred_check_branch
        %818 = sbr.rel (%p816) target = $region60
      $region59: #{tpu_custom_call.1} parent=5 // pred_region
        %s819 = ssub.s32 %s21, 2
        // Predicated region
        $region61: #{tpu_custom_call.1} parent=59 // pred_check
          %p820 = pneg %p162
        $region62: #{tpu_custom_call.1} parent=59 // pred_check_branch
          %822 = sbr.rel (%p820) target = $region64
        $region63: #{tpu_custom_call.1} parent=59 // pred_region
          %s823 = sand.u32 %s147, 1
          %s824 = scalar_lea.sflag [#allocation4], %s823
          %s825 = sand.u32 %s147, 1
          %s826 = smul.addr %s825, 32
          %s827 = scalar_lea.vmem [#allocation11], %s826
          %829 = dma.done %s824, 512
        $region64: #{tpu_custom_call.1} parent=59 // pred_fallthru
          _
      $region60: #{tpu_custom_call.1} parent=5 // pred_fallthru
        _
    $region6: #{tpu_custom_call.1} parent=1 // loop_footer
      %s25 = sadd.s32 1, %s21
    $region7: #{tpu_custom_call.1} parent=1 // loop_footer_branch
      %20 = sbr.rel target = $region3
    $region8: #{tpu_custom_call.1} parent=1 // loop_exit
      _
    %830 = vsyncpa [#allocation3], 1
    %s831 = scalar_lea.sflag [#allocation3], 1
    %832 = vsyncpa %s831, 1
    %833 = vsyncpa [#allocation10], 1
    %s834 = scalar_lea.sflag [#allocation10], 1
    %835 = vsyncpa %s834, 1
    %836 = vsyncpa [#allocation4], 1
    %s837 = scalar_lea.sflag [#allocation4], 1
    %838 = vsyncpa %s837, 1
    %839 = vsyncpa [#allocation5], 1
    %s840 = scalar_lea.sflag [#allocation5], 1
    %841 = vsyncpa %s840, 1
    %842 = vsyncpa [#allocation7], 1

</llo_original>
